<compile_context>
chip_gen: v7x
topology: tpu7x:2x2x1
jax: 0.10.0
libtpu: 0.0.40
codegen_flags: <defaults>
</compile_context>

<pallas_src>
import functools

import jax
import jax.numpy as jnp
from jax.experimental import pallas as pl
from jax.experimental.pallas import tpu as pltpu


def _round_up(n, m):
    return ((n + m - 1) // m) * m


def _cdiv(a, b):
    return (a + b - 1) // b


def _vmem_limit_bytes_default():
    """~75% of physical VMEM (fallback: assume 64 MiB, i.e. the v7x floor)."""
    cap = 64 * 1024 * 1024
    try:
        info = pltpu.get_tpu_info()
        c = getattr(info, "vmem_capacity_bytes", None)
        if c:
            cap = int(c)
    except Exception:
        pass
    return int(cap * 3 // 4)


def _euclid_kernel_f_resident(x_ref, y_ref, xsq_ref, ysq_ref, o_ref, *, eps, squared):
    """One (tb1, tb2) output tile; full feature axis resident.

    x_ref  : (tb1, F)    y_ref  : (tb2, F)
    xsq_ref: (tb1, 1)    ysq_ref: (1, tb2)     (precomputed squared norms, f32)
    o_ref  : (tb1, tb2)
    """
    xy = jax.lax.dot_general(
        x_ref[...], y_ref[...],
        dimension_numbers=(((1,), (1,)), ((), ())),
        preferred_element_type=jnp.float32,
    )
    sq = jnp.maximum(xsq_ref[...] - 2.0 * xy + ysq_ref[...], 0.0)
    out = sq if squared else jnp.sqrt(sq + eps)   # sqrt rides the idle EUP slot
    o_ref[...] = out.astype(o_ref.dtype)


def _euclid_kernel_f_reduced(x_ref, y_ref, xsq_ref, ysq_ref, o_ref, acc_ref,
                             *, eps, squared):
    """Large-F path: feature axis tiled on innermost grid axis, f32 VMEM accumulator."""
    k = pl.program_id(2)

    @pl.when(k == 0)
    def _():
        acc_ref[...] = jnp.zeros_like(acc_ref)

    acc_ref[...] += jax.lax.dot_general(
        x_ref[...], y_ref[...],
        dimension_numbers=(((1,), (1,)), ((), ())),
        preferred_element_type=jnp.float32,
    )

    @pl.when(k == pl.num_programs(2) - 1)
    def _():
        sq = jnp.maximum(xsq_ref[...] - 2.0 * acc_ref[...] + ysq_ref[...], 0.0)
        out = sq if squared else jnp.sqrt(sq + eps)
        o_ref[...] = out.astype(o_ref.dtype)


def euclidean_distance_pallas(x, y, *, squared=False, eps=1e-7, out_dtype=None,
                              matmul_dtype=None, tile_b1=512, tile_b2=512,
                              tile_f=None, vmem_limit_bytes=None):
    """Pallas EuclideanDistance.forward.

    x: (B1, F) or (F,);  y: (B2, F) or (F,)
    returns: (B1, B2) distances (squared if squared=True), dtype = out_dtype or
    the promoted input dtype.
    """
    x = jnp.asarray(x)
    y = jnp.asarray(y)
    if x.ndim == 1:
        x = x[None, :]
    if y.ndim == 1:
        y = y[None, :]
    if x.ndim != 2 or y.ndim != 2:
        raise ValueError("inputs must be 1- or 2-dimensional")
    B1, F = x.shape
    B2, F2 = y.shape
    if F != F2 or F == 0 or B1 == 0 or B2 == 0:
        raise ValueError("feature dimensions must match and all sizes be non-zero")

    if out_dtype is None:
        out_dtype = jnp.result_type(x.dtype, y.dtype)
        if not jnp.issubdtype(out_dtype, jnp.floating):
            out_dtype = jnp.float32
    out_dtype = jnp.dtype(out_dtype)
    eps = float(eps)

    # Hoisted squared norms (always f32, regardless of matmul dtype).
    x_sq = jnp.sum(jnp.square(x.astype(jnp.float32)), axis=-1, keepdims=True)  # (B1,1)
    y_sq = jnp.sum(jnp.square(y.astype(jnp.float32)), axis=-1)[None, :]        # (1,B2)

    # Optional reduced-precision cross-term matmul (validate tolerance before using).
    xm, ym = x, y
    if matmul_dtype is not None and jnp.dtype(matmul_dtype) != x.dtype:
        xm = x.astype(matmul_dtype)
        ym = y.astype(matmul_dtype)

    in_isz = jnp.dtype(xm.dtype).itemsize
    out_isz = out_dtype.itemsize

    # Sublane alignment follows packing: f32 -> 8, bf16 -> 16, int8/fp8 -> 32.
    sub = max(8, 32 // in_isz)

    # Tile sizes: full-extent blocks for tiny dims (always legal), otherwise
    # sublane/lane-aligned tiles clamped to the (aligned) problem size.
    tb1 = B1 if B1 <= sub else min(_round_up(tile_b1, sub), _round_up(B1, sub))
    tb2 = B2 if B2 <= 128 else min(_round_up(tile_b2, 128), _round_up(B2, 128))
    grid_i = _cdiv(B1, tb1)
    grid_j = _cdiv(B2, tb2)

    # Give multi-TensorCore chips (v7x) at least two steps along a parallel axis.
    if grid_i == 1 and grid_j == 1:
        if B2 > 128:
            tb2 = _round_up(_cdiv(B2, 2), 128)
        elif B1 > sub:
            tb1 = _round_up(_cdiv(B1, 2), sub)
        grid_i = _cdiv(B1, tb1)
        grid_j = _cdiv(B2, tb2)

    if vmem_limit_bytes is None:
        vmem_limit_bytes = _vmem_limit_bytes_default()
    vmem_limit_bytes = int(vmem_limit_bytes)
    vmem_budget = vmem_limit_bytes * 4 // 5   # headroom for compiler internal scratch

    # F-resident footprint: double-buffered x/y tiles + double-buffered output + norms.
    fres_bytes = (2 * (tb1 + tb2) * F * in_isz
                  + 2 * tb1 * tb2 * out_isz
                  + 2 * (tb1 + tb2) * 4)
    use_f_reduction = (tile_f is not None) or (fres_bytes > vmem_budget)

    compiler_params_2d = pltpu.CompilerParams(
        dimension_semantics=("parallel", "parallel"),
        vmem_limit_bytes=vmem_limit_bytes,
    )

    if not use_f_reduction:
        kernel = functools.partial(_euclid_kernel_f_resident, eps=eps, squared=squared)
        cost = pl.CostEstimate(
            flops=2 * B1 * B2 * F + 4 * B1 * B2,
            transcendentals=0 if squared else B1 * B2,
            # y (and its norms) are re-streamed once per i-row of tiles.
            bytes_accessed=int(B1 * F * in_isz + grid_i * B2 * F * in_isz
                               + B1 * 4 + grid_i * B2 * 4 + B1 * B2 * out_isz),
        )
        return pl.pallas_call(
            kernel,
            out_shape=jax.ShapeDtypeStruct((B1, B2), out_dtype),
            grid_spec=pltpu.PrefetchScalarGridSpec(
                num_scalar_prefetch=0,
                grid=(grid_i, grid_j),
                in_specs=[
                    pl.BlockSpec((tb1, F), lambda i, j: (i, 0)),   # x row-tile
                    # TODO(synk): add pipeline_mode=pl.Buffered(3) here if profiling
                    # at small F shows exposed y-tile DMA (re-check v7x VMEM budget).
                    pl.BlockSpec((tb2, F), lambda i, j: (j, 0)),   # y row-tile
                    pl.BlockSpec((tb1, 1), lambda i, j: (i, 0)),   # ||x||^2
                    pl.BlockSpec((1, tb2), lambda i, j: (0, j)),   # ||y||^2
                ],
                out_specs=pl.BlockSpec((tb1, tb2), lambda i, j: (i, j)),
            ),
            compiler_params=compiler_params_2d,
            cost_estimate=cost,
        )(xm, ym, x_sq, y_sq)

    # ---- Large-F path: innermost "arbitrary" grid axis over features. ----
    if tile_f is not None:
        tk = _round_up(int(tile_f), 128)
    else:
        fixed = 2 * tb1 * tb2 * out_isz + tb1 * tb2 * 4 + 2 * (tb1 + tb2) * 4
        avail = max(vmem_budget - fixed, 2 * (tb1 + tb2) * 128 * in_isz)
        tk = (avail // (2 * (tb1 + tb2) * in_isz)) // 128 * 128
        tk = max(128, tk)
    tk = min(tk, _round_up(F, 128))

    Fp = _round_up(F, tk)
    if Fp != F:
        # Zero-padding along features is mathematically exact for the dot product;
        # batch dims are never padded.
        xm = jnp.pad(xm, ((0, 0), (0, Fp - F)))
        ym = jnp.pad(ym, ((0, 0), (0, Fp - F)))
    grid_k = Fp // tk

    kernel = functools.partial(_euclid_kernel_f_reduced, eps=eps, squared=squared)
    cost = pl.CostEstimate(
        flops=2 * B1 * B2 * Fp + 4 * B1 * B2,
        transcendentals=0 if squared else B1 * B2,
        bytes_accessed=int(grid_j * B1 * Fp * in_isz + grid_i * B2 * Fp * in_isz
                           + B1 * 4 + grid_i * B2 * 4 + B1 * B2 * out_isz),
    )
    return pl.pallas_call(
        kernel,
        out_shape=jax.ShapeDtypeStruct((B1, B2), out_dtype),
        grid_spec=pltpu.PrefetchScalarGridSpec(
            num_scalar_prefetch=0,
            grid=(grid_i, grid_j, grid_k),
            in_specs=[
                pl.BlockSpec((tb1, tk), lambda i, j, k: (i, k)),   # x tile
                pl.BlockSpec((tb2, tk), lambda i, j, k: (j, k)),   # y tile
                pl.BlockSpec((tb1, 1), lambda i, j, k: (i, 0)),    # ||x||^2
                pl.BlockSpec((1, tb2), lambda i, j, k: (0, j)),    # ||y||^2
            ],
            out_specs=pl.BlockSpec((tb1, tb2), lambda i, j, k: (i, j)),
            scratch_shapes=[pltpu.VMEM((tb1, tb2), jnp.float32)],
        ),
        compiler_params=pltpu.CompilerParams(
            dimension_semantics=("parallel", "parallel", "arbitrary"),
            vmem_limit_bytes=vmem_limit_bytes,
        ),
        cost_estimate=cost,
    )(xm, ym, x_sq, y_sq)


def _reference(x, y, *, squared=False, eps=1e-7):
    """Pure-JAX reference mirroring the PyTorch implementation (f32 math)."""
    if x.ndim == 1:
        x = x[None, :]
    if y.ndim == 1:
        y = y[None, :]
    x = x.astype(jnp.float32)
    y = y.astype(jnp.float32)
    sq = jnp.maximum(
        jnp.sum(x * x, axis=1, keepdims=True)
        - 2.0 * (x @ y.T)
        + jnp.sum(y * y, axis=1)[None, :],
        0.0,
    )
    return sq if squared else jnp.sqrt(sq + eps)


if __name__ == "__main__":
    key = jax.random.PRNGKey(0)
    k1, k2, k3, k4 = jax.random.split(key, 4)

    # Shapes consistent with the module docstring example (non-tile-multiple batches
    # to exercise partial edge blocks), still small.
    B1, B2, F = 100, 30, 128
    x = jax.random.normal(k1, (B1, F), dtype=jnp.float32)
    y = jax.random.normal(k2, (B2, F), dtype=jnp.float32)

    # Module default: squared=False, eps=1e-7 (F-resident 2-D grid path).
    out = jax.block_until_ready(euclidean_distance_pallas(x, y, squared=False, eps=1e-7))
    ref = _reference(x, y, squared=False, eps=1e-7)
    assert out.shape == (B1, B2) and out.dtype == jnp.float32
    assert jnp.allclose(out, ref, rtol=1e-3, atol=1e-3), "mismatch vs reference"

    # Squared variant.
    out_sq = jax.block_until_ready(euclidean_distance_pallas(x, y, squared=True))
    assert jnp.allclose(out_sq, _reference(x, y, squared=True),
                        rtol=1e-3, atol=1e-3), "mismatch (squared)"

    # Force the large-F reduction path (3-D grid + VMEM accumulator) on small data.
    F2 = 256
    x2 = jax.random.normal(k3, (B1, F2), dtype=jnp.float32)
    y2 = jax.random.normal(k4, (B2, F2), dtype=jnp.float32)
    out2 = jax.block_until_ready(euclidean_distance_pallas(x2, y2, tile_f=128))
    assert jnp.allclose(out2, _reference(x2, y2), rtol=1e-3, atol=1e-3), "mismatch (F-red)"

    # bf16 inputs -> bf16 output (halved writeback), norms still accumulated in f32.
    xb = x.astype(jnp.bfloat16)
    yb = y.astype(jnp.bfloat16)
    outb = jax.block_until_ready(euclidean_distance_pallas(xb, yb))
    assert outb.dtype == jnp.bfloat16
    assert jnp.allclose(outb.astype(jnp.float32), _reference(xb, yb),
                        rtol=3e-2, atol=1e-1), "mismatch (bf16)"

    # 1-D input (module reshapes to (1, F)).
    out1 = jax.block_until_ready(euclidean_distance_pallas(x[0], y))
    assert out1.shape == (1, B2)
    assert jnp.allclose(out1, _reference(x[0], y), rtol=1e-3, atol=1e-3), "mismatch (1-D)"

    print("KERNEL_OK")
</pallas_src>

<mosaic_0001>
module attributes {stable_mosaic.version = 11 : i64} {
  func.func @_euclid_kernel_f_resident(%arg0: i32, %arg1: i32, %arg2: memref<56x128xf32, #tpu.memory_space<vmem>>, %arg3: memref<30x128xf32, #tpu.memory_space<vmem>>, %arg4: memref<56x1xf32, #tpu.memory_space<vmem>>, %arg5: memref<1x30xf32, #tpu.memory_space<vmem>>, %arg6: memref<56x30xf32, #tpu.memory_space<vmem>>) attributes {dimension_semantics = [#tpu.dimension_semantics<parallel>, #tpu.dimension_semantics<parallel>], iteration_bounds = array<i64: 2, 1>, scalar_prefetch = 0 : i64, scratch_operands = 0 : i64, tpu.core_type = #tpu.core_type<tc>, window_params = [{transform_indices = @transform_0, window_bounds = array<i64: 56, 128>}, {transform_indices = @transform_1, window_bounds = array<i64: 30, 128>}, {transform_indices = @transform_2, window_bounds = array<i64: 56, 1>}, {transform_indices = @transform_3, window_bounds = array<i64: 1, 30>}, {transform_indices = @transform_4, window_bounds = array<i64: 56, 30>}]} {
    %c0 = arith.constant 0 : index
    %c0_0 = arith.constant 0 : index
    %0 = vector.load %arg2[%c0, %c0_0] : memref<56x128xf32, #tpu.memory_space<vmem>>, vector<56x128xf32>
    %c0_1 = arith.constant 0 : index
    %c0_2 = arith.constant 0 : index
    %1 = vector.load %arg3[%c0_1, %c0_2] : memref<30x128xf32, #tpu.memory_space<vmem>>, vector<30x128xf32>
    %cst = arith.constant dense<0.000000e+00> : vector<56x30xf32>
    %2 = tpu.matmul %0, %1, %cst {dimension_numbers = #tpu.dot_dimension_numbers<[1], [1], [0], [0], [0, 0, 1, 0], [], []>} : vector<56x128xf32>, vector<30x128xf32>, vector<56x30xf32> -> vector<56x30xf32>
    %c0_3 = arith.constant 0 : index
    %c0_4 = arith.constant 0 : index
    %3 = vector.load %arg4[%c0_3, %c0_4] : memref<56x1xf32, #tpu.memory_space<vmem>>, vector<56x1xf32>
    %cst_5 = arith.constant 2.000000e+00 : f32
    %4 = vector.broadcast %cst_5 : f32 to vector<56x30xf32>
    %5 = arith.mulf %4, %2 : vector<56x30xf32>
    %6 = vector.broadcast %3 : vector<56x1xf32> to vector<56x30xf32>
    %7 = arith.subf %6, %5 : vector<56x30xf32>
    %c0_6 = arith.constant 0 : index
    %c0_7 = arith.constant 0 : index
    %8 = vector.load %arg5[%c0_6, %c0_7] : memref<1x30xf32, #tpu.memory_space<vmem>>, vector<1x30xf32>
    %9 = vector.broadcast %8 : vector<1x30xf32> to vector<56x30xf32>
    %10 = arith.addf %7, %9 : vector<56x30xf32>
    %cst_8 = arith.constant 0.000000e+00 : f32
    %11 = vector.broadcast %cst_8 : f32 to vector<56x30xf32>
    %12 = arith.maximumf %10, %11 : vector<56x30xf32>
    %cst_9 = arith.constant 1.000000e-07 : f32
    %13 = vector.broadcast %cst_9 : f32 to vector<56x30xf32>
    %14 = arith.addf %12, %13 : vector<56x30xf32>
    %15 = math.sqrt %14 : vector<56x30xf32>
    %c0_10 = arith.constant 0 : index
    %c0_11 = arith.constant 0 : index
    %16 = vector.load %arg6[%c0_10, %c0_11] : memref<56x30xf32, #tpu.memory_space<vmem>>, vector<56x30xf32>
    tpu.vector_store %arg6[%c0_10, %c0_11], %15 {strides = array<i32>} : memref<56x30xf32, #tpu.memory_space<vmem>>, vector<56x30xf32>,
    return
  }
  func.func @transform_0(%arg0: i32, %arg1: i32) -> (i32, i32) {
    %c0_i32 = arith.constant 0 : i32
    %c0_i32_0 = arith.constant 0 : i32
    return %arg0, %c0_i32 : i32, i32
  }
  func.func @transform_1(%arg0: i32, %arg1: i32) -> (i32, i32) {
    %c0_i32 = arith.constant 0 : i32
    %c0_i32_0 = arith.constant 0 : i32
    return %arg1, %c0_i32 : i32, i32
  }
  func.func @transform_2(%arg0: i32, %arg1: i32) -> (i32, i32) {
    %c0_i32 = arith.constant 0 : i32
    %c0_i32_0 = arith.constant 0 : i32
    return %arg0, %c0_i32 : i32, i32
  }
  func.func @transform_3(%arg0: i32, %arg1: i32) -> (i32, i32) {
    %c0_i32 = arith.constant 0 : i32
    %c0_i32_0 = arith.constant 0 : i32
    return %c0_i32, %arg1 : i32, i32
  }
  func.func @transform_4(%arg0: i32, %arg1: i32) -> (i32, i32) {
    %c0_i32 = arith.constant 0 : i32
    return %arg0, %arg1 : i32, i32
  }
}

</mosaic_0001>

<llo_original>
// kernel: tpu_custom_call.1
$region0: #{tpu_custom_call.1}
  #allocation0 [shape = 'u32[]', space=smem, size = 0x4, offset = 0x4, fixed_abs, tag = 'smem constant byte address 0x4 - core index']
  #allocation1 [shape = 'u32[144,128]{1,0:T(1,128)}', space=vmem, size = 0x12000, scoped, tag = 'internal scratch']
  %s0 = inlined_call_operand.vmem [shape: f32[100,128], index: 0, kind: input, shape index: {}]
  %s1 = inlined_call_operand.hbm [shape: f32[30,128], index: 1, kind: input, shape index: {}]
  %s2 = inlined_call_operand.vmem [shape: f32[100,1], index: 2, kind: input, shape index: {}]
  %s3 = inlined_call_operand.vmem [shape: f32[1,30], index: 3, kind: input, shape index: {}]
  %s4 = inlined_call_operand.vmem [shape: f32[100,30], index: 4, kind: output, shape index: {}]
  %s5 = sld [smem:[#allocation0]]
  $region101: #{tpu_custom_call.1} parent=0
    _
  %s7 = ssub.s32 1, %s5
  %s8 = scalar_select 0, %s7, %s5
  $region1: #{tpu_custom_call.1} parent=0
    #allocation2 [shape = 'u8[16384]{0}', space=vmem, size = 0x4000, scoped, tag = 'input window, operand 1, single buffered']
    #allocation3 [shape = 's32[2]{0}', space=sflag, size = 0x8, scoped, tag = 'scoped memory for tpu_custom_call.1']
    #allocation4 [shape = 'u8[57344]{0}', space=vmem, size = 0xe000, scoped, tag = 'output window, operand 0']
    %9 = vsyncpa [#allocation3], 0
    loop: start=0, step=1, limit=4
    $region2: #{tpu_custom_call.1} parent=1 // loop_pre_header
      _
    $region3: #{tpu_custom_call.1} parent=1 // loop_header
      %s11 = sphi 0, %s15
      %p12 = scmp.ge.s32.totalorder %s11, 4
      %s18 = sphi 0, %s30
      %s19 = sphi 0, %s26
      %s20 = sphi 0, %s18
      %s21 = sphi 0, %s19
      %s22 = sphi 0, %s20
      %s23 = sphi 0, %s21
      %s33 = sphi 0, %s35
      %s36 = sphi 0, %s33
      %s37 = sphi 0, %s36
      %s53 = sphi 0, %s37
      %s59 = sphi 0, %s61
      %s62 = sphi 0, %s59
      %s63 = sphi 0, %s62
      %s79 = sphi 0, %s63
      %s85 = sphi 0, %s87
      %s88 = sphi 0, %s85
      %s89 = sphi 0, %s88
      %s105 = sphi 0, %s89
      %s111 = sphi 0, %s113
      %s114 = sphi 0, %s111
      %s115 = sphi 0, %s114
      %s131 = sphi 0, %s115
      %s139 = sphi 0, %s141
      %s142 = sphi 0, %s139
      %s143 = sphi 0, %s142
      %s159 = sphi 0, %s143
    $region4: #{tpu_custom_call.1} parent=1 // loop_header_branch
      %14 = sbr.rel (%p12) target = $region8
    $region5: #{tpu_custom_call.1} parent=1 // loop_body
      %s16 = ssub.s32 %s11, 1
      %s17 = ssub.s32 %s11, 2
      %s24 = sadd.s32 1, %s19
      %p25 = scmp.ge.s32.totalorder %s24, 1
      %s26 = scalar_select %p25, 0, %s24
      %s27 = sadd.s32 1, %s18
      %s28 = scalar_select %p25, %s27, %s18
      %p29 = scmp.ge.s32.totalorder %s28, 2
      %s30 = scalar_select %p29, 0, %s28
      %s31 = ssub.s32 %s18, %s30
      %p32 = scmp.eq.s32.totalorder %s31, 0
      %s34 = sadd.s32 %s33, 1
      %s35 = scalar_select %p32, %s33, %s34
      %p38 = pneg %p32
      %p39 = scmp.eq.s32.totalorder %s11, 1
      %p40 = por %p38, %p39
      %p41 = scmp.ne.s32.totalorder %s33, %s36
      %p42 = scmp.eq.s32.totalorder %s11, 0
      %p43 = por %p41, %p42
      %p44 = scmp.ne.s32.totalorder %s33, %s36
      %p45 = scmp.eq.s32.totalorder %s16, 1
      %p46 = por %p44, %p45
      %p47 = scmp.ne.s32.totalorder %s36, %s37
      %p48 = scmp.eq.s32.totalorder %s16, 0
      %p49 = por %p47, %p48
      %p50 = scmp.ne.s32.totalorder %s36, %s37
      %p51 = scmp.eq.s32.totalorder %s17, 1
      %p52 = por %p50, %p51
      %p54 = scmp.ne.s32.totalorder %s37, %s53
      %p55 = scmp.eq.s32.totalorder %s17, 0
      %p56 = por %p54, %p55
      %s57 = ssub.s32 %s19, %s26
      %p58 = scmp.eq.s32.totalorder %s57, 0
      %s60 = sadd.s32 %s59, 1
      %s61 = scalar_select %p58, %s59, %s60
      %p64 = pneg %p58
      %p65 = scmp.eq.s32.totalorder %s11, 1
      %p66 = por %p64, %p65
      %p67 = scmp.ne.s32.totalorder %s59, %s62
      %p68 = scmp.eq.s32.totalorder %s11, 0
      %p69 = por %p67, %p68
      %p70 = scmp.ne.s32.totalorder %s59, %s62
      %p71 = scmp.eq.s32.totalorder %s16, 1
      %p72 = por %p70, %p71
      %p73 = scmp.ne.s32.totalorder %s62, %s63
      %p74 = scmp.eq.s32.totalorder %s16, 0
      %p75 = por %p73, %p74
      %p76 = scmp.ne.s32.totalorder %s62, %s63
      %p77 = scmp.eq.s32.totalorder %s17, 1
      %p78 = por %p76, %p77
      %p80 = scmp.ne.s32.totalorder %s63, %s79
      %p81 = scmp.eq.s32.totalorder %s17, 0
      %p82 = por %p80, %p81
      %s83 = ssub.s32 %s18, %s30
      %p84 = scmp.eq.s32.totalorder %s83, 0
      %s86 = sadd.s32 %s85, 1
      %s87 = scalar_select %p84, %s85, %s86
      %p90 = pneg %p84
      %p91 = scmp.eq.s32.totalorder %s11, 1
      %p92 = por %p90, %p91
      %p93 = scmp.ne.s32.totalorder %s85, %s88
      %p94 = scmp.eq.s32.totalorder %s11, 0
      %p95 = por %p93, %p94
      %p96 = scmp.ne.s32.totalorder %s85, %s88
      %p97 = scmp.eq.s32.totalorder %s16, 1
      %p98 = por %p96, %p97
      %p99 = scmp.ne.s32.totalorder %s88, %s89
      %p100 = scmp.eq.s32.totalorder %s16, 0
      %p101 = por %p99, %p100
      %p102 = scmp.ne.s32.totalorder %s88, %s89
      %p103 = scmp.eq.s32.totalorder %s17, 1
      %p104 = por %p102, %p103
      %p106 = scmp.ne.s32.totalorder %s89, %s105
      %p107 = scmp.eq.s32.totalorder %s17, 0
      %p108 = por %p106, %p107
      %s109 = ssub.s32 %s19, %s26
      %p110 = scmp.eq.s32.totalorder %s109, 0
      %s112 = sadd.s32 %s111, 1
      %s113 = scalar_select %p110, %s111, %s112
      %p116 = pneg %p110
      %p117 = scmp.eq.s32.totalorder %s11, 1
      %p118 = por %p116, %p117
      %p119 = scmp.ne.s32.totalorder %s111, %s114
      %p120 = scmp.eq.s32.totalorder %s11, 0
      %p121 = por %p119, %p120
      %p122 = scmp.ne.s32.totalorder %s111, %s114
      %p123 = scmp.eq.s32.totalorder %s16, 1
      %p124 = por %p122, %p123
      %p125 = scmp.ne.s32.totalorder %s114, %s115
      %p126 = scmp.eq.s32.totalorder %s16, 0
      %p127 = por %p125, %p126
      %p128 = scmp.ne.s32.totalorder %s114, %s115
      %p129 = scmp.eq.s32.totalorder %s17, 1
      %p130 = por %p128, %p129
      %p132 = scmp.ne.s32.totalorder %s115, %s131
      %p133 = scmp.eq.s32.totalorder %s17, 0
      %p134 = por %p132, %p133
      %s135 = ssub.s32 %s18, %s30
      %s136 = ssub.s32 %s19, %s26
      %s137 = sor.u32 %s135, %s136
      %p138 = scmp.eq.s32.totalorder %s137, 0
      %s140 = sadd.s32 %s139, 1
      %s141 = scalar_select %p138, %s139, %s140
      %p144 = pneg %p138
      %p145 = scmp.eq.s32.totalorder %s11, 1
      %p146 = por %p144, %p145
      %p147 = scmp.ne.s32.totalorder %s139, %s142
      %p148 = scmp.eq.s32.totalorder %s11, 0
      %p149 = por %p147, %p148
      %p150 = scmp.ne.s32.totalorder %s139, %s142
      %p151 = scmp.eq.s32.totalorder %s16, 1
      %p152 = por %p150, %p151
      %p153 = scmp.ne.s32.totalorder %s142, %s143
      %p154 = scmp.eq.s32.totalorder %s16, 0
      %p155 = por %p153, %p154
      %p156 = scmp.ne.s32.totalorder %s142, %s143
      %p157 = scmp.eq.s32.totalorder %s17, 1
      %p158 = por %p156, %p157
      %p160 = scmp.ne.s32.totalorder %s143, %s159
      %p161 = scmp.eq.s32.totalorder %s17, 0
      %p162 = por %p160, %p161
      %p163 = scmp.le.s32.totalorder 1, %s11
      %p164 = scmp.lt.s32.totalorder %s11, 3
      %p165 = pnand %p163, %p164
      %p166 = pneg %p165
      // Predicated region
      $region9: #{tpu_custom_call.1} parent=5 // pred_check
        _
      $region10: #{tpu_custom_call.1} parent=5 // pred_check_branch
        %168 = sbr.rel (%p165) target = $region12
      $region11: #{tpu_custom_call.1} parent=5 // pred_region
        %s169 = ssub.s32 %s11, 1
        // Predicated region
        $region13: #{tpu_custom_call.1} parent=11 // pred_check
          %p170 = pneg %p75
        $region14: #{tpu_custom_call.1} parent=11 // pred_check_branch
          %172 = sbr.rel (%p170) target = $region16
        $region15: #{tpu_custom_call.1} parent=11 // pred_region
          %s173 = smul.u32 4, %s21
          %s175 = ssub.s32 512, 512
          %176 = vsyncadd [#allocation3], %s175
          %s177 = smul.addr %s173, 128
          %s178 = scalar_lea.hbm %s1, %s177
          %s179 = sshll.u32 [#allocation2], 4
          %s180 = int_to_ptr.vmem [resolvable:$true] %s179
          %185 = dma.hbm_to_vmem [thread:$0]  %s178, 512, %s180, [#allocation3], 128, 128, 8
        $region16: #{tpu_custom_call.1} parent=11 // pred_fallthru
          _
        // Predicated region
        $region17: #{tpu_custom_call.1} parent=11 // pred_check
          %p186 = pneg %p127
        $region18: #{tpu_custom_call.1} parent=11 // pred_check_branch
          %188 = sbr.rel (%p186) target = $region20
        $region19: #{tpu_custom_call.1} parent=11 // pred_region
          %p189 = scmp.lt.s32.totalorder %s21, 0
          %s190 = scalar_select %p189, %s21, 0
          %s191 = scalar_lea.vmem %s3, %s190
        $region20: #{tpu_custom_call.1} parent=11 // pred_fallthru
          _
      $region12: #{tpu_custom_call.1} parent=5 // pred_fallthru
        _
      %p192 = scmp.lt.s32.totalorder %s11, 2
      // Predicated region
      $region21: #{tpu_custom_call.1} parent=5 // pred_check
        %p193 = pneg %p192
      $region22: #{tpu_custom_call.1} parent=5 // pred_check_branch
        %195 = sbr.rel (%p193) target = $region24
      $region23: #{tpu_custom_call.1} parent=5 // pred_region
        // Predicated region
        $region25: #{tpu_custom_call.1} parent=23 // pred_check
          %p196 = pneg %p43
        $region26: #{tpu_custom_call.1} parent=23 // pred_check_branch
          %198 = sbr.rel (%p196) target = $region28
        $region27: #{tpu_custom_call.1} parent=23 // pred_region
          %s199 = smul.u32 7, %s18
          %s200 = ssub.s32 13, %s199
          %p201 = scmp.lt.s32.totalorder %s200, 7
          %s202 = scalar_select %p201, %s200, 7
          %s203 = smul.u32 128, %s202
          %p204 = scmp.lt.s32.totalorder %s199, 12
          %s205 = scalar_select %p204, %s199, 12
          %s206 = smul.addr %s205, 8
          %s207 = scalar_lea.vmem %s0, %s206
          %s208 = smul.u32 7, %s18
          %s209 = ssub.s32 13, %s208
          %p210 = scmp.lt.s32.totalorder %s209, 7
          %s211 = scalar_select %p210, %s209, 7
          %s212 = smul.u32 128, %s211
        $region28: #{tpu_custom_call.1} parent=23 // pred_fallthru
          _
        // Predicated region
        $region29: #{tpu_custom_call.1} parent=23 // pred_check
          %p213 = pneg %p95
        $region30: #{tpu_custom_call.1} parent=23 // pred_check_branch
          %215 = sbr.rel (%p213) target = $region32
        $region31: #{tpu_custom_call.1} parent=23 // pred_region
          %s216 = smul.u32 7, %s18
          %s217 = ssub.s32 13, %s216
          %p218 = scmp.lt.s32.totalorder %s217, 7
          %s219 = scalar_select %p218, %s217, 7
          %s220 = smul.u32 128, %s219
          %p221 = scmp.lt.s32.totalorder %s216, 12
          %s222 = scalar_select %p221, %s216, 12
          %s223 = smul.addr %s222, 8
          %s224 = scalar_lea.vmem %s2, %s223
          %s225 = smul.u32 7, %s18
          %s226 = ssub.s32 13, %s225
          %p227 = scmp.lt.s32.totalorder %s226, 7
          %s228 = scalar_select %p227, %s226, 7
          %s229 = smul.u32 128, %s228
        $region32: #{tpu_custom_call.1} parent=23 // pred_fallthru
          _
      $region24: #{tpu_custom_call.1} parent=5 // pred_fallthru
        _
      %p230 = scmp.le.s32.totalorder 1, %s11
      %p231 = scmp.lt.s32.totalorder %s11, 3
      %p232 = pnand %p230, %p231
      %p233 = pneg %p232
      // Predicated region
      $region33: #{tpu_custom_call.1} parent=5 // pred_check
        _
      $region34: #{tpu_custom_call.1} parent=5 // pred_check_branch
        %235 = sbr.rel (%p232) target = $region36
      $region35: #{tpu_custom_call.1} parent=5 // pred_region
        %s236 = ssub.s32 %s11, 1
        // Predicated region
        $region37: #{tpu_custom_call.1} parent=35 // pred_check
          %p237 = pneg %p75
        $region38: #{tpu_custom_call.1} parent=35 // pred_check_branch
          %239 = sbr.rel (%p237) target = $region40
        $region39: #{tpu_custom_call.1} parent=35 // pred_region
          %240 = dma.done [#allocation3], 512
        $region40: #{tpu_custom_call.1} parent=35 // pred_fallthru
          _
        %s241 = smul.u32 7, %s20
        %s242 = ssub.s32 13, %s241
        %p243 = scmp.lt.s32.totalorder %s242, 7
        %s244 = scalar_select %p243, %s242, 7
        %s245 = smul.u32 128, %s244
        %p246 = scmp.lt.s32.totalorder %s241, 12
        %s247 = scalar_select %p246, %s241, 12
        %s248 = smul.addr %s247, 8
        %s249 = scalar_lea.vmem %s0, %s248
        %p250 = pneg %p49
        %p251 = pneg %p46
        %p252 = pneg %p75
        %p253 = pneg %p72
        %s254 = smul.u32 7, %s20
        %s255 = ssub.s32 13, %s254
        %p256 = scmp.lt.s32.totalorder %s255, 7
        %s257 = scalar_select %p256, %s255, 7
        %s258 = smul.u32 128, %s257
        %p259 = scmp.lt.s32.totalorder %s254, 12
        %s260 = scalar_select %p259, %s254, 12
        %s261 = smul.addr %s260, 8
        %s262 = scalar_lea.vmem %s2, %s261
        %p263 = pneg %p101
        %p264 = pneg %p98
        %p265 = scmp.lt.s32.totalorder %s21, 0
        %s266 = scalar_select %p265, %s21, 0
        %s267 = scalar_lea.vmem %s3, %s266
        %p268 = pneg %p127
        %p269 = pneg %p124
        %p270 = pneg %p155
        %p271 = pneg %p152
        %s272 = sand.u32 %s142, 1
        %s273 = sand.u32 %s142, 1
        %s274 = smul.addr %s273, 56
        %s275 = scalar_lea.vmem [#allocation4], %s274
        %s276 = smul.u32 7, %s20
        %s277 = ssub.s32 13, %s276
        %p278 = scmp.lt.s32.totalorder %s277, 7
        %s279 = scalar_select %p278, %s277, 7
        %s280 = smul.u32 128, %s279
        %p281 = scmp.lt.s32.totalorder %s276, 12
        %s282 = scalar_select %p281, %s276, 12
        %s283 = smul.addr %s282, 8
        %s284 = scalar_lea.vmem %s0, %s283
        %s285 = smul.u32 7, %s20
        %s286 = ssub.s32 13, %s285
        %p287 = scmp.lt.s32.totalorder %s286, 7
        %s288 = scalar_select %p287, %s286, 7
        %s289 = smul.u32 128, %s288
        %s290 = smul.u32 4, %s21
        %s291 = smul.u32 7, %s20
        %s292 = ssub.s32 13, %s291
        %p293 = scmp.lt.s32.totalorder %s292, 7
        %s294 = scalar_select %p293, %s292, 7
        %s295 = smul.u32 128, %s294
        %p296 = scmp.lt.s32.totalorder %s291, 12
        %s297 = scalar_select %p296, %s291, 12
        %s298 = smul.addr %s297, 8
        %s299 = scalar_lea.vmem %s2, %s298
        %s300 = smul.u32 7, %s20
        %s301 = ssub.s32 13, %s300
        %p302 = scmp.lt.s32.totalorder %s301, 7
        %s303 = scalar_select %p302, %s301, 7
        %s304 = smul.u32 128, %s303
        %p305 = scmp.lt.s32.totalorder %s21, 0
        %s306 = scalar_select %p305, %s21, 0
        %s307 = scalar_lea.vmem %s3, %s306
        %s308 = smul.u32 7, %s20
        %s309 = ssub.s32 13, %s308
        %p310 = scmp.lt.s32.totalorder %s309, 7
        %s311 = scalar_select %p310, %s309, 7
        %s312 = smul.u32 128, %s311
        %v313 = vld [vmem:[%s284] sm:$0xff]
        %v314 = vld [vmem:[%s284 + $0x8] sm:$0xff]
        %v315 = vld [vmem:[%s284 + $0x10] sm:$0xff]
        %v316 = vld [vmem:[%s284 + $0x18] sm:$0xff]
        %v317 = vld [vmem:[%s284 + $0x20] sm:$0xff]
        %v318 = vld [vmem:[%s284 + $0x28] sm:$0xff]
        %v319 = vld [vmem:[%s284 + $0x30] sm:$0xff]
        %v320 = vld [vmem:[#allocation2] sm:$0xff]
        %v321 = vld [vmem:[#allocation2 + $0x8] sm:$0xff]
        %v322 = vld [vmem:[#allocation2 + $0x10] sm:$0xff]
        %v323 = vld [vmem:[#allocation2 + $0x18] sm:$0x3f]
        %324 = vmatprep.subr.mxu0 0.0
        %325 = vmatpush1.xpose.msra.mxu0 %v320
        %326 = vmatprep.subr.mxu0 0.0
        %327 = vmatpush1.xpose.msra.mxu0 %v321
        %328 = vmatprep.subr.mxu0 0.0
        %329 = vmatpush1.xpose.msra.mxu0 %v322
        %330 = vmatprep.subr.mxu0 0.0
        %331 = vmatpush1.xpose.msra.mxu0 %v323
        %332 = vmatprep.subr.mxu0 0.0
        %333 = vmatpush1.xpose.msra.mxu0 0.0
        %334 = vmatprep.subr.mxu0 0.0
        %335 = vmatpush1.xpose.msra.mxu0 0.0
        %336 = vmatprep.subr.mxu0 0.0
        %337 = vmatpush1.xpose.msra.mxu0 0.0
        %338 = vmatprep.subr.mxu0 0.0
        %339 = vmatpush1.xpose.msra.mxu0 0.0
        %340 = vmatprep.subr.mxu0 0.0
        %341 = vmatpush1.xpose.msra.mxu0 0.0
        %342 = vmatprep.subr.mxu0 0.0
        %343 = vmatpush1.xpose.msra.mxu0 0.0
        %344 = vmatprep.subr.mxu0 0.0
        %345 = vmatpush1.xpose.msra.mxu0 0.0
        %346 = vmatprep.subr.mxu0 0.0
        %347 = vmatpush1.xpose.msra.mxu0 0.0
        %348 = vmatprep.subr.mxu0 0.0
        %349 = vmatpush1.xpose.msra.mxu0 0.0
        %350 = vmatprep.subr.mxu0 0.0
        %351 = vmatpush1.xpose.msra.mxu0 0.0
        %352 = vmatprep.subr.mxu0 0.0
        %353 = vmatpush1.xpose.msra.mxu0 0.0
        %354 = vmatprep.subr.mxu0 0.0
        %355 = vmatpush1.xpose.msra.mxu0 0.0
        %356 = vmatprep.subr.mxu0 0.0
        %357 = vmatpush1.xpose.msra.mxu0 0.0
        %358 = vmatprep.subr.mxu0 0.0
        %359 = vmatpush1.xpose.msra.mxu0 0.0
        %360 = vmatprep.subr.mxu0 0.0
        %361 = vmatpush1.xpose.msra.mxu0 0.0
        %362 = vmatprep.subr.mxu0 0.0
        %363 = vmatpush1.xpose.msra.mxu0 0.0
        %364 = vmatprep.subr.mxu0 0.0
        %365 = vmatpush1.xpose.msra.mxu0 0.0
        %366 = vmatprep.subr.mxu0 0.0
        %367 = vmatpush1.xpose.msra.mxu0 0.0
        %368 = vmatprep.subr.mxu0 0.0
        %369 = vmatpush1.xpose.msra.mxu0 0.0
        %370 = vmatprep.subr.mxu0 0.0
        %371 = vmatpush1.xpose.msra.mxu0 0.0
        %372 = vmatprep.subr.mxu0 0.0
        %373 = vmatpush1.xpose.msra.mxu0 0.0
        %374 = vmatprep.subr.mxu0 0.0
        %375 = vmatpush1.xpose.msra.mxu0 0.0
        %376 = vmatprep.subr.mxu0 0.0
        %377 = vmatpush1.xpose.msra.mxu0 0.0
        %378 = vmatprep.subr.mxu0 0.0
        %379 = vmatpush1.xpose.msra.mxu0 0.0
        %380 = vmatprep.subr.mxu0 0.0
        %381 = vmatpush1.xpose.msra.mxu0 0.0
        %382 = vmatprep.subr.mxu0 0.0
        %383 = vmatpush1.xpose.msra.mxu0 0.0
        %384 = vmatprep.subr.mxu0 0.0
        %385 = vmatpush1.xpose.msra.mxu0 0.0
        %386 = vmatprep.subr.mxu0 0.0
        %387 = vmatpush1.xpose.msra.mxu0 0.0
        %388 = vmatprep.mubr.f32.mxu0 0.0
        %389 = vmatmul.mubr.f32.gmra.mrb[0].mxu0 %v313
        %v390 = vpop.f32.mrb[0].mxu0
        %v391 = vadd.f32 0.0, %v390
        %v392 = vpop.f32.mrb[0].mxu0
        %393 = vmatprep.mubr.f32.mxu0 0.0
        %394 = vmatmul.mubr.f32.gmra.mrb[0].mxu0 %v314
        %v395 = vpop.f32.mrb[0].mxu0
        %v396 = vadd.f32 0.0, %v395
        %v397 = vpop.f32.mrb[0].mxu0
        %398 = vmatprep.mubr.f32.mxu0 0.0
        %399 = vmatmul.mubr.f32.gmra.mrb[0].mxu0 %v315
        %v400 = vpop.f32.mrb[0].mxu0
        %v401 = vadd.f32 0.0, %v400
        %v402 = vpop.f32.mrb[0].mxu0
        %403 = vmatprep.mubr.f32.mxu0 0.0
        %404 = vmatmul.mubr.f32.gmra.mrb[0].mxu0 %v316
        %v405 = vpop.f32.mrb[0].mxu0
        %v406 = vadd.f32 0.0, %v405
        %v407 = vpop.f32.mrb[0].mxu0
        %408 = vmatprep.mubr.f32.mxu0 0.0
        %409 = vmatmul.mubr.f32.gmra.mrb[0].mxu0 %v317
        %v410 = vpop.f32.mrb[0].mxu0
        %v411 = vadd.f32 0.0, %v410
        %v412 = vpop.f32.mrb[0].mxu0
        %413 = vmatprep.mubr.f32.mxu0 0.0
        %414 = vmatmul.mubr.f32.gmra.mrb[0].mxu0 %v318
        %v415 = vpop.f32.mrb[0].mxu0
        %v416 = vadd.f32 0.0, %v415
        %v417 = vpop.f32.mrb[0].mxu0
        %418 = vmatprep.mubr.f32.mxu0 0.0
        %419 = vmatmul.mubr.f32.gmra.mrb[0].mxu0 %v319
        %v420 = vpop.f32.mrb[0].mxu0
        %v421 = vadd.f32 0.0, %v420
        %v422 = vpop.f32.mrb[0].mxu0
        %423 = vdwg.mxu0
        %v424 = vld [vmem:[%s299] sm:$0xff]
        %v425 = vld [vmem:[%s299 + $0x8] sm:$0xff]
        %v426 = vld [vmem:[%s299 + $0x10] sm:$0xff]
        %v427 = vld [vmem:[%s299 + $0x18] sm:$0xff]
        %v428 = vld [vmem:[%s299 + $0x20] sm:$0xff]
        %v429 = vld [vmem:[%s299 + $0x28] sm:$0xff]
        %v430 = vld [vmem:[%s299 + $0x30] sm:$0xff]
        %v431 = vmul.f32 %v391, 2.0
        %v432 = vmul.f32 %v396, 2.0
        %v433 = vmul.f32 %v401, 2.0
        %v434 = vmul.f32 %v406, 2.0
        %v435 = vmul.f32 %v411, 2.0
        %v436 = vmul.f32 %v416, 2.0
        %v437 = vmul.f32 %v421, 2.0
        %439 = vset.pattern.permute.xlu0 0
        %440 = vperm.xlu0 %439, %v424
        %v441 = vpop.permute.xlu0 %440
        %444 = vset.pattern.permute.xlu0 0
        %445 = vperm.xlu0 %444, %v425
        %v446 = vpop.permute.xlu0 %445
        %449 = vset.pattern.permute.xlu0 0
        %450 = vperm.xlu0 %449, %v426
        %v451 = vpop.permute.xlu0 %450
        %454 = vset.pattern.permute.xlu0 0
        %455 = vperm.xlu0 %454, %v427
        %v456 = vpop.permute.xlu0 %455
        %459 = vset.pattern.permute.xlu0 0
        %460 = vperm.xlu0 %459, %v428
        %v461 = vpop.permute.xlu0 %460
        %464 = vset.pattern.permute.xlu0 0
        %465 = vperm.xlu0 %464, %v429
        %v466 = vpop.permute.xlu0 %465
        %469 = vset.pattern.permute.xlu0 0
        %470 = vperm.xlu0 %469, %v430
        %v471 = vpop.permute.xlu0 %470
        %v473 = vsub.f32 %v441, %v431
        %v474 = vsub.f32 %v446, %v432
        %v475 = vsub.f32 %v451, %v433
        %v476 = vsub.f32 %v456, %v434
        %v477 = vsub.f32 %v461, %v435
        %v478 = vsub.f32 %v466, %v436
        %v479 = vsub.f32 %v471, %v437
        %v480 = vld [vmem:[%s307] sm:$0x1]
        %v482 = vlaneseq
        %v483 = vshrl.u32 %v482, 7
        %v484 = vsub.s32 0, %v483
        %v485 = vrot.slane %v480, %v484
        %v487 = vadd.f32 %v473, %v485
        %v488 = vadd.f32 %v474, %v485
        %v489 = vadd.f32 %v475, %v485
        %v490 = vadd.f32 %v476, %v485
        %v491 = vadd.f32 %v477, %v485
        %v492 = vadd.f32 %v478, %v485
        %v493 = vadd.f32 %v479, %v485
        %v494 = vmax.f32 %v487, 0.0
        %v495 = vmax.f32 %v488, 0.0
        %v496 = vmax.f32 %v489, 0.0
        %v497 = vmax.f32 %v490, 0.0
        %v498 = vmax.f32 %v491, 0.0
        %v499 = vmax.f32 %v492, 0.0
        %v500 = vmax.f32 %v493, 0.0
        %v501 = vadd.f32 %v494, 1e-07
        %v502 = vadd.f32 %v495, 1e-07
        %v503 = vadd.f32 %v496, 1e-07
        %v504 = vadd.f32 %v497, 1e-07
        %v505 = vadd.f32 %v498, 1e-07
        %v506 = vadd.f32 %v499, 1e-07
        %v507 = vadd.f32 %v500, 1e-07
        %v508 = vrsqrt.pop %v501
        %v509 = vmul.f32 %v501, %v508
        %vm510 = vcmp.eq.f32.partialorder %v501, inf
        %v511 = vsel %vm510, %v501, %v509
        %vm512 = vcmp.eq.f32.partialorder %v501, 0.0
        %v513 = vand.u32 %v501, 2147483648
        %v514 = vsel %vm512, %v513, %v511
        %v515 = vrsqrt.pop %v502
        %v516 = vmul.f32 %v502, %v515
        %vm517 = vcmp.eq.f32.partialorder %v502, inf
        %v518 = vsel %vm517, %v502, %v516
        %vm519 = vcmp.eq.f32.partialorder %v502, 0.0
        %v520 = vand.u32 %v502, 2147483648
        %v521 = vsel %vm519, %v520, %v518
        %v522 = vrsqrt.pop %v503
        %v523 = vmul.f32 %v503, %v522
        %vm524 = vcmp.eq.f32.partialorder %v503, inf
        %v525 = vsel %vm524, %v503, %v523
        %vm526 = vcmp.eq.f32.partialorder %v503, 0.0
        %v527 = vand.u32 %v503, 2147483648
        %v528 = vsel %vm526, %v527, %v525
        %v529 = vrsqrt.pop %v504
        %v530 = vmul.f32 %v504, %v529
        %vm531 = vcmp.eq.f32.partialorder %v504, inf
        %v532 = vsel %vm531, %v504, %v530
        %vm533 = vcmp.eq.f32.partialorder %v504, 0.0
        %v534 = vand.u32 %v504, 2147483648
        %v535 = vsel %vm533, %v534, %v532
        %v536 = vrsqrt.pop %v505
        %v537 = vmul.f32 %v505, %v536
        %vm538 = vcmp.eq.f32.partialorder %v505, inf
        %v539 = vsel %vm538, %v505, %v537
        %vm540 = vcmp.eq.f32.partialorder %v505, 0.0
        %v541 = vand.u32 %v505, 2147483648
        %v542 = vsel %vm540, %v541, %v539
        %v543 = vrsqrt.pop %v506
        %v544 = vmul.f32 %v506, %v543
        %vm545 = vcmp.eq.f32.partialorder %v506, inf
        %v546 = vsel %vm545, %v506, %v544
        %vm547 = vcmp.eq.f32.partialorder %v506, 0.0
        %v548 = vand.u32 %v506, 2147483648
        %v549 = vsel %vm547, %v548, %v546
        %v550 = vrsqrt.pop %v507
        %v551 = vmul.f32 %v507, %v550
        %vm552 = vcmp.eq.f32.partialorder %v507, inf
        %v553 = vsel %vm552, %v507, %v551
        %vm554 = vcmp.eq.f32.partialorder %v507, 0.0
        %v555 = vand.u32 %v507, 2147483648
        %v556 = vsel %vm554, %v555, %v553
        %vm557 = vcmask 244736
        %558 = vst.msk [vmem:[%s275] sm:$0xff] %vm557, %v514
        %559 = vst.msk [vmem:[%s275 + $0x8] sm:$0xff] %vm557, %v521
        %560 = vst.msk [vmem:[%s275 + $0x10] sm:$0xff] %vm557, %v528
        %561 = vst.msk [vmem:[%s275 + $0x18] sm:$0xff] %vm557, %v535
        %562 = vst.msk [vmem:[%s275 + $0x20] sm:$0xff] %vm557, %v542
        %563 = vst.msk [vmem:[%s275 + $0x28] sm:$0xff] %vm557, %v549
        %564 = vst.msk [vmem:[%s275 + $0x30] sm:$0xff] %vm557, %v556
        %s565 = sand.u32 %s142, 1
        %s566 = sand.u32 %s142, 1
        %s567 = smul.addr %s566, 56
        %s568 = scalar_lea.vmem [#allocation4], %s567
        // Predicated region
        $region41: #{tpu_custom_call.1} parent=35 // pred_check
          %p569 = pneg %p152
        $region42: #{tpu_custom_call.1} parent=35 // pred_check_branch
          %571 = sbr.rel (%p569) target = $region44
        $region43: #{tpu_custom_call.1} parent=35 // pred_region
          %s572 = smul.u32 7, %s20
          %s573 = ssub.s32 13, %s572
          %p574 = scmp.lt.s32.totalorder %s573, 7
          %s575 = scalar_select %p574, %s573, 7
          %s576 = smul.u32 128, %s575
          %p577 = scmp.ne.s32.totalorder 0, %s576
          %s578 = sadd.s32 %s21, %s572
          %s579 = smul.addr %s578, 8
          %s580 = scalar_lea.vmem %s4, %s579
          // Predicated region
          $region45: #{tpu_custom_call.1} parent=43 // pred_check
            %p581 = pneg %p577
          $region46: #{tpu_custom_call.1} parent=43 // pred_check_branch
            %583 = sbr.rel (%p581) target = $region48
          $region47: #{tpu_custom_call.1} parent=43 // pred_region
            // Predicated region
            $region49: #{tpu_custom_call.1} parent=47 // pred_check
              _
            $region50: #{tpu_custom_call.1} parent=47 // pred_check_branch
              %585 = sbr.rel (0) target = $region52
            $region51: #{tpu_custom_call.1} parent=47 // pred_region
              // Predicated region
              $region71: #{tpu_custom_call.1} parent=51 // pred_check
                _
              $region72: #{tpu_custom_call.1} parent=51 // pred_check_branch
                %647 = sbr.rel (0) target = $region74
              $region73: #{tpu_custom_call.1} parent=51 // pred_region
                %s648 = sdiv.u32.pop %s575, 7
                %s649 = srem.u32.pop %s575, 7
                // While loop
                $region75: #{tpu_custom_call.1} parent=73 // loop_pre_header
                  _
                $region76: #{tpu_custom_call.1} parent=73 // loop_header
                  %s651 = sphi 0, %s653
                  %p652 = scmp.ge.s32.totalorder %s651, %s648
                  %s656 = sphi 0, %s675
                  %s657 = sphi %s568, %s678
                  %s658 = sphi %s580, %s679
                $region77: #{tpu_custom_call.1} parent=73 // loop_header_branch
                  %655 = sbr.rel (%p652) target = $region81
                $region78: #{tpu_custom_call.1} parent=73 // loop_body
                  %v659 = vld [vmem:[%s657] sm:$0xff]
                  %660 = vst [vmem:[%s658] sm:$0xff] %v659
                  %v661 = vld [vmem:[%s657 + $0x8] sm:$0xff]
                  %662 = vst [vmem:[%s658 + $0x8] sm:$0xff] %v661
                  %v663 = vld [vmem:[%s657 + $0x10] sm:$0xff]
                  %664 = vst [vmem:[%s658 + $0x10] sm:$0xff] %v663
                  %v665 = vld [vmem:[%s657 + $0x18] sm:$0xff]
                  %666 = vst [vmem:[%s658 + $0x18] sm:$0xff] %v665
                  %v667 = vld [vmem:[%s657 + $0x20] sm:$0xff]
                  %668 = vst [vmem:[%s658 + $0x20] sm:$0xff] %v667
                  %v669 = vld [vmem:[%s657 + $0x28] sm:$0xff]
                  %670 = vst [vmem:[%s658 + $0x28] sm:$0xff] %v669
                  %v671 = vld [vmem:[%s657 + $0x30] sm:$0xff]
                  %672 = vst [vmem:[%s658 + $0x30] sm:$0xff] %v671
                  %s673 = sadd.s32 1, %s656
                  %p674 = scmp.ge.s32.totalorder %s673, %s648
                  %s675 = scalar_select %p674, 0, %s673
                  %s676 = smul.u32 %s675, 56
                  %s677 = smul.u32 %s675, 56
                  %s678 = scalar_lea.vmem %s568, %s676 [#allocation4]
                  %s679 = scalar_lea.vmem %s580, %s677
                $region79: #{tpu_custom_call.1} parent=73 // loop_footer
                  %s653 = sadd.s32 %s651, 1
                $region80: #{tpu_custom_call.1} parent=73 // loop_footer_branch
                  %650 = sbr.rel target = $region76
                $region81: #{tpu_custom_call.1} parent=73 // loop_exit
                  _
                %s680 = sdiv.u32.pop %s575, 7
                %s681 = srem.u32.pop %s575, 7
                %s682 = smul.u32 %s680, 7
                %s683 = smul.u32 8, %s682
                %s684 = scalar_lea.vmem %s568, %s683 [#allocation4]
                %s685 = smul.u32 8, %s682
                %s686 = scalar_lea.vmem %s580, %s685
                // While loop
                $region82: #{tpu_custom_call.1} parent=73 // loop_pre_header
                  _
                $region83: #{tpu_custom_call.1} parent=73 // loop_header
                  %s688 = sphi 0, %s690
                  %p689 = scmp.ge.s32.totalorder %s688, %s681
                  %s693 = sphi 0, %s700
                  %s694 = sphi %s684, %s703
                  %s695 = sphi %s686, %s704
                $region84: #{tpu_custom_call.1} parent=73 // loop_header_branch
                  %692 = sbr.rel (%p689) target = $region88
                $region85: #{tpu_custom_call.1} parent=73 // loop_body
                  %v696 = vld [vmem:[%s694] sm:$0xff]
                  %697 = vst [vmem:[%s695] sm:$0xff] %v696
                  %s698 = sadd.s32 1, %s693
                  %p699 = scmp.ge.s32.totalorder %s698, %s681
                  %s700 = scalar_select %p699, 0, %s698
                  %s701 = smul.u32 %s700, 8
                  %s702 = smul.u32 %s700, 8
                  %s703 = scalar_lea.vmem %s684, %s701 [#allocation4]
                  %s704 = scalar_lea.vmem %s686, %s702
                $region86: #{tpu_custom_call.1} parent=73 // loop_footer
                  %s690 = sadd.s32 %s688, 1
                $region87: #{tpu_custom_call.1} parent=73 // loop_footer_branch
                  %687 = sbr.rel target = $region83
                $region88: #{tpu_custom_call.1} parent=73 // loop_exit
                  _
              $region74: #{tpu_custom_call.1} parent=51 // pred_fallthru
                _
              // Predicated region
              $region89: #{tpu_custom_call.1} parent=51 // pred_check
                _
              $region90: #{tpu_custom_call.1} parent=51 // pred_check_branch
                %706 = sbr.rel target = $region92
              $region91: #{tpu_custom_call.1} parent=51 // pred_region
                _
              $region92: #{tpu_custom_call.1} parent=51 // pred_fallthru
                _
            $region52: #{tpu_custom_call.1} parent=47 // pred_fallthru
              _
            // Predicated region
            $region53: #{tpu_custom_call.1} parent=47 // pred_check
              _
            $region54: #{tpu_custom_call.1} parent=47 // pred_check_branch
              %587 = sbr.rel target = $region56
            $region55: #{tpu_custom_call.1} parent=47 // pred_region
              %s589 = sdiv.u32.pop %s575, 7
              %s590 = srem.u32.pop %s575, 7
              // While loop
              $region57: #{tpu_custom_call.1} parent=55 // loop_pre_header
                _
              $region58: #{tpu_custom_call.1} parent=55 // loop_header
                %s592 = sphi 0, %s594
                %p593 = scmp.ge.s32.totalorder %s592, %s589
                %s597 = sphi 0, %s616
                %s598 = sphi %s568, %s619
                %s599 = sphi %s580, %s620
              $region59: #{tpu_custom_call.1} parent=55 // loop_header_branch
                %596 = sbr.rel (%p593) target = $region63
              $region60: #{tpu_custom_call.1} parent=55 // loop_body
                %v600 = vld [vmem:[%s598] sm:$0xff]
                %601 = vst [vmem:[%s599] sm:$0xff] %v600
                %v602 = vld [vmem:[%s598 + $0x8] sm:$0xff]
                %603 = vst [vmem:[%s599 + $0x8] sm:$0xff] %v602
                %v604 = vld [vmem:[%s598 + $0x10] sm:$0xff]
                %605 = vst [vmem:[%s599 + $0x10] sm:$0xff] %v604
                %v606 = vld [vmem:[%s598 + $0x18] sm:$0xff]
                %607 = vst [vmem:[%s599 + $0x18] sm:$0xff] %v606
                %v608 = vld [vmem:[%s598 + $0x20] sm:$0xff]
                %609 = vst [vmem:[%s599 + $0x20] sm:$0xff] %v608
                %v610 = vld [vmem:[%s598 + $0x28] sm:$0xff]
                %611 = vst [vmem:[%s599 + $0x28] sm:$0xff] %v610
                %v612 = vld [vmem:[%s598 + $0x30] sm:$0xff]
                %613 = vst [vmem:[%s599 + $0x30] sm:$0xff] %v612
                %s614 = sadd.s32 1, %s597
                %p615 = scmp.ge.s32.totalorder %s614, %s589
                %s616 = scalar_select %p615, 0, %s614
                %s617 = smul.u32 %s616, 56
                %s618 = smul.u32 %s616, 56
                %s619 = scalar_lea.vmem %s568, %s617 [#allocation4]
                %s620 = scalar_lea.vmem %s580, %s618
              $region61: #{tpu_custom_call.1} parent=55 // loop_footer
                %s594 = sadd.s32 %s592, 1
              $region62: #{tpu_custom_call.1} parent=55 // loop_footer_branch
                %591 = sbr.rel target = $region58
              $region63: #{tpu_custom_call.1} parent=55 // loop_exit
                _
              %s621 = sdiv.u32.pop %s575, 7
              %s622 = srem.u32.pop %s575, 7
              %s623 = smul.u32 %s621, 7
              %s624 = smul.u32 8, %s623
              %s625 = scalar_lea.vmem %s568, %s624 [#allocation4]
              %s626 = smul.u32 8, %s623
              %s627 = scalar_lea.vmem %s580, %s626
              // While loop
              $region64: #{tpu_custom_call.1} parent=55 // loop_pre_header
                _
              $region65: #{tpu_custom_call.1} parent=55 // loop_header
                %s629 = sphi 0, %s631
                %p630 = scmp.ge.s32.totalorder %s629, %s622
                %s634 = sphi 0, %s641
                %s635 = sphi %s625, %s644
                %s636 = sphi %s627, %s645
              $region66: #{tpu_custom_call.1} parent=55 // loop_header_branch
                %633 = sbr.rel (%p630) target = $region70
              $region67: #{tpu_custom_call.1} parent=55 // loop_body
                %v637 = vld [vmem:[%s635] sm:$0xff]
                %638 = vst [vmem:[%s636] sm:$0xff] %v637
                %s639 = sadd.s32 1, %s634
                %p640 = scmp.ge.s32.totalorder %s639, %s622
                %s641 = scalar_select %p640, 0, %s639
                %s642 = smul.u32 %s641, 8
                %s643 = smul.u32 %s641, 8
                %s644 = scalar_lea.vmem %s625, %s642 [#allocation4]
                %s645 = scalar_lea.vmem %s627, %s643
              $region68: #{tpu_custom_call.1} parent=55 // loop_footer
                %s631 = sadd.s32 %s629, 1
              $region69: #{tpu_custom_call.1} parent=55 // loop_footer_branch
                %628 = sbr.rel target = $region65
              $region70: #{tpu_custom_call.1} parent=55 // loop_exit
                _
            $region56: #{tpu_custom_call.1} parent=47 // pred_fallthru
              _
          $region48: #{tpu_custom_call.1} parent=43 // pred_fallthru
            _
          %707 = vnop
        $region44: #{tpu_custom_call.1} parent=35 // pred_fallthru
          _
      $region36: #{tpu_custom_call.1} parent=5 // pred_fallthru
        _
      %p708 = scmp.le.s32.totalorder 2, %s11
      // Predicated region
      $region93: #{tpu_custom_call.1} parent=5 // pred_check
        %p709 = pneg %p708
      $region94: #{tpu_custom_call.1} parent=5 // pred_check_branch
        %711 = sbr.rel (%p709) target = $region96
      $region95: #{tpu_custom_call.1} parent=5 // pred_region
        %s712 = ssub.s32 %s11, 2
        // Predicated region
        $region97: #{tpu_custom_call.1} parent=95 // pred_check
          %p713 = pneg %p158
        $region98: #{tpu_custom_call.1} parent=95 // pred_check_branch
          %715 = sbr.rel (%p713) target = $region100
        $region99: #{tpu_custom_call.1} parent=95 // pred_region
          %s716 = sand.u32 %s143, 1
          %s717 = sand.u32 %s143, 1
          %s718 = smul.addr %s717, 56
          %s719 = scalar_lea.vmem [#allocation4], %s718
        $region100: #{tpu_custom_call.1} parent=95 // pred_fallthru
          _
      $region96: #{tpu_custom_call.1} parent=5 // pred_fallthru
        _
    $region6: #{tpu_custom_call.1} parent=1 // loop_footer
      %s15 = sadd.s32 1, %s11
    $region7: #{tpu_custom_call.1} parent=1 // loop_footer_branch
      %10 = sbr.rel target = $region3
    $region8: #{tpu_custom_call.1} parent=1 // loop_exit
      _
    %720 = vsyncpa [#allocation3], 1
    %s721 = scalar_lea.sflag [#allocation3], 1
    %722 = vsyncpa %s721, 1

</llo_original>
